<compile_context>
chip_gen: v6e
topology: v6e:2x2x1
jax: 0.10.0
libtpu: 0.0.40
codegen_flags: <defaults>
</compile_context>

<pallas_src>
import math
import functools

import jax
import jax.numpy as jnp
from jax.experimental import pallas as pl
from jax.experimental.pallas import tpu as pltpu


OUT_PAD = 128   # lane-dense output width; real logits live in [..., :2]
LN_EPS = 1e-5   # nn.LayerNorm default


def tran_model_kernel(x_ref, bias_ref, wqkv_ref, wout_ref, consts_ref, out_ref, *, D):
    """Whole forward pass in one grid-less invocation.

    x_ref:      (T, D)      flattened activations, T = N*L
    bias_ref:   (T, T)      block-diagonal attention bias (precomputed)
    wqkv_ref:   (D, 384)    [wq*scale | wk | wv], each zero-padded to 128 lanes
    wout_ref:   (D, 256)    [wo | w2], each zero-padded to 128 lanes
    consts_ref: (8, 128)    rows: bq*scale, bk, bv, bo, ln_g, ln_b, b2, 0 (padded)
    out_ref:    (T, 128)    lane-dense output
    """
    x = x_ref[...]                                                       # (T, D)

    # --- fused, lane-aligned Q/K/V projection (one MXU op) ------------------
    qkv = jnp.dot(x, wqkv_ref[...], preferred_element_type=jnp.float32)  # (T, 384)
    q = qkv[:, 0:128] + consts_ref[0:1, :]        # 128-lane aligned views (no rotation)
    k = qkv[:, 128:256] + consts_ref[1:2, :]
    v = qkv[:, 256:256 + D] + consts_ref[2:3, :D]

    # --- batched attention: one matmul + one softmax for all batches --------
    # cross-batch entries carry a -1e4 bias -> exp underflows to exactly 0.
    s = jax.lax.dot_general(q, k, (((1,), (1,)), ((), ())),
                            preferred_element_type=jnp.float32)          # (T, T)
    s = s + bias_ref[...]
    m = jnp.max(s, axis=-1, keepdims=True)
    e = jnp.exp(s - m)
    p = e * pl.reciprocal(jnp.sum(e, axis=-1, keepdims=True), approx=False)
    ctx = jnp.dot(p, v, preferred_element_type=jnp.float32)              # (T, D)

    # --- BertSelfOutput: dense -> (+bias, +residual) -> LayerNorm ------------
    h = jnp.dot(ctx, wout_ref[:, 0:D], preferred_element_type=jnp.float32)
    h = h + consts_ref[3:4, :D] + x                                      # bo + residual
    mu = jnp.mean(h, axis=-1, keepdims=True)
    var = jnp.mean((h - mu) ** 2, axis=-1, keepdims=True)
    hn = (h - mu) * jax.lax.rsqrt(var + LN_EPS)
    hn = hn * consts_ref[4:5, :D] + consts_ref[5:6, :D]                  # gamma, beta

    # --- final Linear(D -> 2), padded to 128 lanes (unmasked dense store) ----
    out_ref[...] = jnp.dot(hn, wout_ref[:, 128:256],
                           preferred_element_type=jnp.float32) + consts_ref[6:7, :]


def pack_params(params, *, num_heads):
    """One-time host-side parameter packing (kept OUT of the per-call path)."""
    D = params["wq"].shape[0]
    scale = 1.0 / math.sqrt(D // num_heads)

    def pad_cols(w):
        return jnp.zeros((w.shape[0], 128), jnp.float32).at[:, :w.shape[1]].set(w)

    def pad_row(v):
        return jnp.zeros((128,), jnp.float32).at[:v.shape[0]].set(v)

    wqkv = jnp.concatenate([pad_cols(params["wq"] * scale),
                            pad_cols(params["wk"]),
                            pad_cols(params["wv"])], axis=1)             # (D, 384)
    wout = jnp.concatenate([pad_cols(params["wo"]),
                            pad_cols(params["w2"])], axis=1)             # (D, 256)
    consts = jnp.stack([pad_row(params["bq"] * scale),
                        pad_row(params["bk"]),
                        pad_row(params["bv"]),
                        pad_row(params["bo"]),
                        pad_row(params["ln_g"]),
                        pad_row(params["ln_b"]),
                        pad_row(params["b2"]),
                        jnp.zeros((128,), jnp.float32)], axis=0)         # (8, 128)
    return {"wqkv": wqkv, "wout": wout, "consts": consts}


@jax.jit
def tran_model_forward(x, attention_mask, packed):
    """x: (N, L, D) float32, attention_mask: (N, L) (1 = keep, 0 = mask)."""
    N, L, D = x.shape
    T = N * L
    x2 = x.reshape(T, D).astype(jnp.float32)

    # block-diagonal attention bias: (1-mask)*-1e4 within a batch, -1e4 across batches
    mask_flat = attention_mask.astype(jnp.float32).reshape(T)
    same_batch = jnp.kron(jnp.eye(N, dtype=jnp.float32), jnp.ones((L, L), jnp.float32))
    bias = (1.0 - same_batch * mask_flat[None, :]) * (-10000.0)          # (T, T)

    kernel = functools.partial(tran_model_kernel, D=D)
    vmem = pl.BlockSpec(memory_space=pltpu.MemorySpace.VMEM)

    flops = 2 * T * (D * 384 + T * 128 + T * D + D * D + D * 128)
    bytes_accessed = 4 * (T * D + T * T + D * 384 + D * 256 + 8 * 128 + T * OUT_PAD)

    # Single grid-less invocation: all operands whole in VMEM (total < 100 KB).
    out = pl.pallas_call(
        kernel,
        out_shape=jax.ShapeDtypeStruct((T, OUT_PAD), jnp.float32),
        in_specs=[vmem] * 5,
        out_specs=vmem,
        cost_estimate=pl.CostEstimate(flops=flops,
                                      transcendentals=T * T + 2 * T,
                                      bytes_accessed=bytes_accessed),
    )(x2, bias, packed["wqkv"], packed["wout"], packed["consts"])

    return out.reshape(N, L, OUT_PAD)[:, :, :2]


def reference_forward(x, attention_mask, params, *, num_heads):
    """Pure-JAX reference mirroring the PyTorch forward (eval mode)."""
    N, L, D = x.shape
    head_size = D // num_heads
    q = x @ params["wq"] + params["bq"]
    k = x @ params["wk"] + params["bk"]
    v = x @ params["wv"] + params["bv"]
    scores = jnp.einsum("nld,nmd->nlm", q, k) / math.sqrt(head_size)
    scores = scores + (1.0 - attention_mask[:, None, :]) * -10000.0
    probs = jax.nn.softmax(scores, axis=-1)
    ctx = jnp.einsum("nlm,nmd->nld", probs, v)
    h = ctx @ params["wo"] + params["bo"] + x
    mu = h.mean(-1, keepdims=True)
    var = ((h - mu) ** 2).mean(-1, keepdims=True)
    hn = (h - mu) / jnp.sqrt(var + 1e-5) * params["ln_g"] + params["ln_b"]
    return hn @ params["w2"] + params["b2"]


if __name__ == "__main__":
    # config: hidden_size=32, num_attention_heads=4, initializer_range=0.02
    N, L, D = 2, 8, 32
    num_heads = 4
    init_range = 0.02

    key = jax.random.PRNGKey(0)
    ks = jax.random.split(key, 8)

    params = {
        # Linear weights ~ N(0, initializer_range), biases = 0 (reset_parameters)
        "wq": jax.random.normal(ks[0], (D, D), jnp.float32) * init_range,
        "bq": jnp.zeros((D,), jnp.float32),
        "wk": jax.random.normal(ks[1], (D, D), jnp.float32) * init_range,
        "bk": jnp.zeros((D,), jnp.float32),
        "wv": jax.random.normal(ks[2], (D, D), jnp.float32) * init_range,
        "bv": jnp.zeros((D,), jnp.float32),
        "wo": jax.random.normal(ks[3], (D, D), jnp.float32) * init_range,
        "bo": jnp.zeros((D,), jnp.float32),
        "ln_g": jnp.ones((D,), jnp.float32),
        "ln_b": jnp.zeros((D,), jnp.float32),
        "w2": jax.random.normal(ks[4], (D, 2), jnp.float32) * init_range,
        "b2": jnp.zeros((2,), jnp.float32),
    }

    x = jax.random.normal(ks[5], (N, L, D), jnp.float32)
    y_data = jax.random.normal(ks[6], (N, L), jnp.float32)  # unused by forward (as in PyTorch)
    # attention mask: keep first 6 positions of batch 0, all of batch 1
    attention_mask = jnp.stack([
        jnp.concatenate([jnp.ones((6,)), jnp.zeros((2,))]),
        jnp.ones((L,)),
    ]).astype(jnp.float32)

    # one-time packing (outside the per-call path)
    packed = jax.tree_util.tree_map(jax.block_until_ready,
                                    pack_params(params, num_heads=num_heads))

    out = tran_model_forward(x, attention_mask, packed)
    out = jax.block_until_ready(out)

    ref = reference_forward(x, attention_mask, params, num_heads=num_heads)
    assert out.shape == (N, L, 2)
    assert jnp.allclose(out, ref, atol=1e-4, rtol=1e-4), float(jnp.max(jnp.abs(out - ref)))

    print("KERNEL_OK")
</pallas_src>

<mosaic_0001>
module attributes {stable_mosaic.version = 11 : i64} {
  func.func @tran_model_kernel(%arg0: memref<16x32xf32, #tpu.memory_space<vmem>>, %arg1: memref<16x16xf32, #tpu.memory_space<vmem>>, %arg2: memref<32x384xf32, #tpu.memory_space<vmem>>, %arg3: memref<32x256xf32, #tpu.memory_space<vmem>>, %arg4: memref<8x128xf32, #tpu.memory_space<vmem>>, %arg5: memref<16x128xf32, #tpu.memory_space<vmem>>) attributes {dimension_semantics = [], scalar_prefetch = 0 : i64, scratch_operands = 0 : i64, tpu.core_type = #tpu.core_type<tc>} {
    %c0 = arith.constant 0 : index
    %c0_0 = arith.constant 0 : index
    %0 = vector.load %arg0[%c0, %c0_0] : memref<16x32xf32, #tpu.memory_space<vmem>>, vector<16x32xf32>
    %c0_1 = arith.constant 0 : index
    %c0_2 = arith.constant 0 : index
    %1 = vector.load %arg2[%c0_1, %c0_2] : memref<32x384xf32, #tpu.memory_space<vmem>>, vector<32x384xf32>
    %cst = arith.constant dense<0.000000e+00> : vector<16x384xf32>
    %2 = tpu.matmul %0, %1, %cst {dimension_numbers = #tpu.dot_dimension_numbers<[1], [0], [0], [1], [0, 0, 1, 1], [], []>} : vector<16x32xf32>, vector<32x384xf32>, vector<16x384xf32> -> vector<16x384xf32>
    %3 = vector.extract_strided_slice %2 {offsets = [0, 0], sizes = [16, 128], strides = [1, 1]} : vector<16x384xf32> to vector<16x128xf32>
    %c0_3 = arith.constant 0 : index
    %c0_4 = arith.constant 0 : index
    %4 = vector.load %arg4[%c0_3, %c0_4] : memref<8x128xf32, #tpu.memory_space<vmem>>, vector<1x128xf32>
    %5 = vector.broadcast %4 : vector<1x128xf32> to vector<16x128xf32>
    %6 = arith.addf %3, %5 : vector<16x128xf32>
    %7 = vector.extract_strided_slice %2 {offsets = [0, 128], sizes = [16, 128], strides = [1, 1]} : vector<16x384xf32> to vector<16x128xf32>
    %c1 = arith.constant 1 : index
    %c0_5 = arith.constant 0 : index
    %8 = vector.load %arg4[%c1, %c0_5] : memref<8x128xf32, #tpu.memory_space<vmem>>, vector<1x128xf32>
    %9 = vector.broadcast %8 : vector<1x128xf32> to vector<16x128xf32>
    %10 = arith.addf %7, %9 : vector<16x128xf32>
    %11 = vector.extract_strided_slice %2 {offsets = [0, 256], sizes = [16, 32], strides = [1, 1]} : vector<16x384xf32> to vector<16x32xf32>
    %c2 = arith.constant 2 : index
    %c0_6 = arith.constant 0 : index
    %12 = vector.load %arg4[%c2, %c0_6] : memref<8x128xf32, #tpu.memory_space<vmem>>, vector<1x32xf32>
    %13 = vector.broadcast %12 : vector<1x32xf32> to vector<16x32xf32>
    %14 = arith.addf %11, %13 : vector<16x32xf32>
    %cst_7 = arith.constant dense<0.000000e+00> : vector<16x16xf32>
    %15 = tpu.matmul %6, %10, %cst_7 {dimension_numbers = #tpu.dot_dimension_numbers<[1], [1], [0], [0], [0, 0, 1, 0], [], []>} : vector<16x128xf32>, vector<16x128xf32>, vector<16x16xf32> -> vector<16x16xf32>
    %c0_8 = arith.constant 0 : index
    %c0_9 = arith.constant 0 : index
    %16 = vector.load %arg1[%c0_8, %c0_9] : memref<16x16xf32, #tpu.memory_space<vmem>>, vector<16x16xf32>
    %17 = arith.addf %15, %16 : vector<16x16xf32>
    %cst_10 = arith.constant dense<0xFF800000> : vector<16xf32>
    %18 = vector.multi_reduction <maximumf>, %17, %cst_10 [1] : vector<16x16xf32> to vector<16xf32>
    %19 = vector.shape_cast %18 : vector<16xf32> to vector<16x1xf32>
    %20 = vector.broadcast %19 : vector<16x1xf32> to vector<16x16xf32>
    %21 = arith.subf %17, %20 : vector<16x16xf32>
    %22 = math.exp %21 : vector<16x16xf32>
    %cst_11 = arith.constant dense<0.000000e+00> : vector<16xf32>
    %23 = vector.multi_reduction <add>, %22, %cst_11 [1] : vector<16x16xf32> to vector<16xf32>
    %24 = vector.shape_cast %23 : vector<16xf32> to vector<16x1xf32>
    %25 = tpu.reciprocal %24 : vector<16x1xf32> -> vector<16x1xf32>
    %26 = vector.broadcast %25 : vector<16x1xf32> to vector<16x16xf32>
    %27 = arith.mulf %22, %26 : vector<16x16xf32>
    %cst_12 = arith.constant dense<0.000000e+00> : vector<16x32xf32>
    %28 = tpu.matmul %27, %14, %cst_12 {dimension_numbers = #tpu.dot_dimension_numbers<[1], [0], [0], [1], [0, 0, 1, 1], [], []>} : vector<16x16xf32>, vector<16x32xf32>, vector<16x32xf32> -> vector<16x32xf32>
    %c0_13 = arith.constant 0 : index
    %c0_14 = arith.constant 0 : index
    %29 = vector.load %arg3[%c0_13, %c0_14] : memref<32x256xf32, #tpu.memory_space<vmem>>, vector<32x32xf32>
    %cst_15 = arith.constant dense<0.000000e+00> : vector<16x32xf32>
    %30 = tpu.matmul %28, %29, %cst_15 {dimension_numbers = #tpu.dot_dimension_numbers<[1], [0], [0], [1], [0, 0, 1, 1], [], []>} : vector<16x32xf32>, vector<32x32xf32>, vector<16x32xf32> -> vector<16x32xf32>
    %c3 = arith.constant 3 : index
    %c0_16 = arith.constant 0 : index
    %31 = vector.load %arg4[%c3, %c0_16] : memref<8x128xf32, #tpu.memory_space<vmem>>, vector<1x32xf32>
    %32 = vector.broadcast %31 : vector<1x32xf32> to vector<16x32xf32>
    %33 = arith.addf %30, %32 : vector<16x32xf32>
    %34 = arith.addf %33, %0 : vector<16x32xf32>
    %cst_17 = arith.constant dense<0.000000e+00> : vector<16xf32>
    %35 = vector.multi_reduction <add>, %34, %cst_17 [1] : vector<16x32xf32> to vector<16xf32>
    %36 = vector.shape_cast %35 : vector<16xf32> to vector<16x1xf32>
    %cst_18 = arith.constant 3.200000e+01 : f32
    %37 = vector.broadcast %cst_18 : f32 to vector<16x1xf32>
    %38 = arith.divf %36, %37 : vector<16x1xf32>
    %39 = vector.broadcast %38 : vector<16x1xf32> to vector<16x32xf32>
    %40 = arith.subf %34, %39 : vector<16x32xf32>
    %41 = arith.mulf %40, %40 : vector<16x32xf32>
    %cst_19 = arith.constant dense<0.000000e+00> : vector<16xf32>
    %42 = vector.multi_reduction <add>, %41, %cst_19 [1] : vector<16x32xf32> to vector<16xf32>
    %43 = vector.shape_cast %42 : vector<16xf32> to vector<16x1xf32>
    %cst_20 = arith.constant 3.200000e+01 : f32
    %44 = vector.broadcast %cst_20 : f32 to vector<16x1xf32>
    %45 = arith.divf %43, %44 : vector<16x1xf32>
    %46 = vector.broadcast %38 : vector<16x1xf32> to vector<16x32xf32>
    %47 = arith.subf %34, %46 : vector<16x32xf32>
    %cst_21 = arith.constant 9.99999974E-6 : f32
    %48 = vector.broadcast %cst_21 : f32 to vector<16x1xf32>
    %49 = arith.addf %45, %48 : vector<16x1xf32>
    %50 = math.rsqrt %49 : vector<16x1xf32>
    %51 = vector.broadcast %50 : vector<16x1xf32> to vector<16x32xf32>
    %52 = arith.mulf %47, %51 : vector<16x32xf32>
    %c4 = arith.constant 4 : index
    %c0_22 = arith.constant 0 : index
    %53 = vector.load %arg4[%c4, %c0_22] : memref<8x128xf32, #tpu.memory_space<vmem>>, vector<1x32xf32>
    %54 = vector.broadcast %53 : vector<1x32xf32> to vector<16x32xf32>
    %55 = arith.mulf %52, %54 : vector<16x32xf32>
    %c5 = arith.constant 5 : index
    %c0_23 = arith.constant 0 : index
    %56 = vector.load %arg4[%c5, %c0_23] : memref<8x128xf32, #tpu.memory_space<vmem>>, vector<1x32xf32>
    %57 = vector.broadcast %56 : vector<1x32xf32> to vector<16x32xf32>
    %58 = arith.addf %55, %57 : vector<16x32xf32>
    %c0_24 = arith.constant 0 : index
    %c128 = arith.constant 128 : index
    %59 = vector.load %arg3[%c0_24, %c128] : memref<32x256xf32, #tpu.memory_space<vmem>>, vector<32x128xf32>
    %cst_25 = arith.constant dense<0.000000e+00> : vector<16x128xf32>
    %60 = tpu.matmul %58, %59, %cst_25 {dimension_numbers = #tpu.dot_dimension_numbers<[1], [0], [0], [1], [0, 0, 1, 1], [], []>} : vector<16x32xf32>, vector<32x128xf32>, vector<16x128xf32> -> vector<16x128xf32>
    %c6 = arith.constant 6 : index
    %c0_26 = arith.constant 0 : index
    %61 = vector.load %arg4[%c6, %c0_26] : memref<8x128xf32, #tpu.memory_space<vmem>>, vector<1x128xf32>
    %62 = vector.broadcast %61 : vector<1x128xf32> to vector<16x128xf32>
    %63 = arith.addf %60, %62 : vector<16x128xf32>
    %c0_27 = arith.constant 0 : index
    %c0_28 = arith.constant 0 : index
    %64 = vector.load %arg5[%c0_27, %c0_28] : memref<16x128xf32, #tpu.memory_space<vmem>>, vector<16x128xf32>
    tpu.vector_store %arg5[%c0_27, %c0_28], %63 {strides = array<i32>} : memref<16x128xf32, #tpu.memory_space<vmem>>, vector<16x128xf32>,
    return
  }
}

</mosaic_0001>

<llo_original>
// kernel: mul.22
$region0: #{mul.22}
  %s0 = inlined_call_operand.vmem [shape: f32[2,8], index: 0, kind: input, shape index: {}]
  %s1 = inlined_call_operand.vmem [shape: f32[16], index: 1, kind: output, shape index: {}]
  $region1: #{mul.22} parent=0
    #allocation0 [shape = 'u8[4096]{0}', space=vmem, size = 0x1000, scoped, tag = 'scoped mem for output reshape']
    #allocation1 [shape = 'u8[4096]{0}', space=vmem, size = 0x1000, scoped, tag = 'scoped mem for input reshape']
    %s3 = sshll.u32 1, 2
    %s4 = ssub.s32 %s3, 1
    %v5 = vld [vmem:[%s0] sm:%s4]
    %6 = vst [vmem:[#allocation1] sm:%s4] %v5
    %v7 = vld [vmem:[#allocation1] sm:$0x1]
    %vm8 = vcmask 64512
    %9 = vst.msk [vmem:[#allocation0] sm:$0x1] %vm8, %v7
    %s10 = scalar_lea.vmem [#allocation1], 1
    %v11 = vld [vmem:[%s10] sm:$0x1]
    %12 = vrot.lane.b32.xlu0 %v11, 8
    %v13 = vpop.permute.xlu0 %12
    %vm14 = vcmask 130112
    %15 = vst.msk [vmem:[#allocation0] sm:$0x1] %vm14, %v13
    %s17 = sshll.u32 1, 1
    %s18 = ssub.s32 %s17, 1
    %v20 = vld [vmem:[#allocation0] sm:%s18]
    %s21 = sshll.u32 1, 1
    %s22 = ssub.s32 %s21, 1
    %23 = vst [vmem:[%s1] sm:%s22] %v20

// kernel: tran_model_forward.1
$region0: #{tran_model_forward.1}
  #allocation0 [shape = 'u32[]', space=smem, size = 0x4, offset = 0x4, fixed_abs, tag = 'smem constant byte address 0x4 - core index']
  #allocation1 [shape = 'u32[144,128]{1,0:T(1,128)}', space=vmem, size = 0x12000, scoped, tag = 'internal scratch']
  %s0 = inlined_call_operand.vmem [shape: f32[16,32], index: 0, kind: input, shape index: {}]
  %s1 = inlined_call_operand.vmem [shape: f32[16,16], index: 1, kind: input, shape index: {}]
  %s2 = inlined_call_operand.vmem [shape: f32[32,384], index: 2, kind: input, shape index: {}]
  %s3 = inlined_call_operand.hbm [shape: f32[32,256], index: 3, kind: input, shape index: {}]
  %s4 = inlined_call_operand.vmem [shape: f32[8,128], index: 4, kind: input, shape index: {}]
  %s5 = inlined_call_operand.vmem [shape: f32[16,128], index: 5, kind: output, shape index: {}]
  %s6 = sld [smem:[#allocation0]]
  $region34: #{tran_model_forward.1} parent=0
    _
  %s8 = ssub.s32 1, %s6
  %s9 = scalar_select 0, %s8, %s6
  $region1: #{tran_model_forward.1} parent=0
    #allocation2 [shape = 'u8[32768]{0}', space=vmem, size = 0x8000, scoped, tag = 'input window, operand 3, single buffered']
    #allocation3 [shape = 's32[1]{0}', space=sflag, size = 0x4, scoped, tag = 'scoped memory for tran_model_forward.1']
    %10 = vsyncpa [#allocation3], 0
    // Predicated region
    $region2: #{tran_model_forward.1} parent=1 // pred_check
      _
    $region3: #{tran_model_forward.1} parent=1 // pred_check_branch
      %12 = sbr.rel (0) target = $region5
    $region4: #{tran_model_forward.1} parent=1 // pred_region
      _
    $region5: #{tran_model_forward.1} parent=1 // pred_fallthru
      _
    // Predicated region
    $region6: #{tran_model_forward.1} parent=1 // pred_check
      _
    $region7: #{tran_model_forward.1} parent=1 // pred_check_branch
      %14 = sbr.rel (0) target = $region9
    $region8: #{tran_model_forward.1} parent=1 // pred_region
      _
    $region9: #{tran_model_forward.1} parent=1 // pred_fallthru
      _
    // Predicated region
    $region10: #{tran_model_forward.1} parent=1 // pred_check
      _
    $region11: #{tran_model_forward.1} parent=1 // pred_check_branch
      %16 = sbr.rel (0) target = $region13
    $region12: #{tran_model_forward.1} parent=1 // pred_region
      _
    $region13: #{tran_model_forward.1} parent=1 // pred_fallthru
      _
    // Predicated region
    $region14: #{tran_model_forward.1} parent=1 // pred_check
      _
    $region15: #{tran_model_forward.1} parent=1 // pred_check_branch
      %18 = sbr.rel (0) target = $region17
    $region16: #{tran_model_forward.1} parent=1 // pred_region
      %s20 = ssub.s32 1024, 1024
      %21 = vsyncadd [#allocation3], %s20
      %s22 = sshll.u32 [#allocation2], 4
      %s23 = int_to_ptr.vmem [resolvable:$true] %s22
      %28 = dma.hbm_to_vmem [thread:$0]  %s3, 1024, %s23, [#allocation3], 256, 256, 16
    $region17: #{tran_model_forward.1} parent=1 // pred_fallthru
      _
    // Predicated region
    $region18: #{tran_model_forward.1} parent=1 // pred_check
      _
    $region19: #{tran_model_forward.1} parent=1 // pred_check_branch
      %30 = sbr.rel (0) target = $region21
    $region20: #{tran_model_forward.1} parent=1 // pred_region
      _
    $region21: #{tran_model_forward.1} parent=1 // pred_fallthru
      _
    // Predicated region
    $region22: #{tran_model_forward.1} parent=1 // pred_check
      _
    $region23: #{tran_model_forward.1} parent=1 // pred_check_branch
      %32 = sbr.rel (0) target = $region25
    $region24: #{tran_model_forward.1} parent=1 // pred_region
      %33 = dma.done [#allocation3], 1024
    $region25: #{tran_model_forward.1} parent=1 // pred_fallthru
      _
    %v34 = vld [vmem:[%s0] sm:$0xff]
    %v35 = vld [vmem:[%s0 + $0x8] sm:$0xff]
    %v36 = vld [vmem:[%s2] sm:$0xff]
    %v37 = vld [vmem:[%s2 + $0x8] sm:$0xff]
    %v38 = vld [vmem:[%s2 + $0x10] sm:$0xff]
    %v39 = vld [vmem:[%s2 + $0x18] sm:$0xff]
    %v40 = vld [vmem:[%s2 + $0x20] sm:$0xff]
    %v41 = vld [vmem:[%s2 + $0x28] sm:$0xff]
    %v42 = vld [vmem:[%s2 + $0x30] sm:$0xff]
    %v43 = vld [vmem:[%s2 + $0x38] sm:$0xff]
    %v44 = vld [vmem:[%s2 + $0x40] sm:$0xff]
    %v45 = vld [vmem:[%s2 + $0x48] sm:$0xff]
    %v46 = vld [vmem:[%s2 + $0x50] sm:$0xff]
    %v47 = vld [vmem:[%s2 + $0x58] sm:$0xff]
    %vm48 = vcmask 261120
    %v50 = vsel %vm48, %v34, 0
    %v53 = vsel %vm48, %v35, 0
    %55 = vmatprep.subr.mxu0 0.0
    %56 = vmatpush1.msra.mxu0 0.0
    %57 = vmatprep.subr.mxu0 0.0
    %58 = vmatpush1.msra.mxu0 0.0
    %59 = vmatprep.subr.mxu0 0.0
    %60 = vmatpush1.msra.mxu0 0.0
    %61 = vmatprep.subr.mxu0 0.0
    %62 = vmatpush1.msra.mxu0 0.0
    %63 = vmatprep.subr.mxu0 0.0
    %64 = vmatpush1.msra.mxu0 0.0
    %65 = vmatprep.subr.mxu0 0.0
    %66 = vmatpush1.msra.mxu0 0.0
    %67 = vmatprep.subr.mxu0 0.0
    %68 = vmatpush1.msra.mxu0 0.0
    %69 = vmatprep.subr.mxu0 0.0
    %70 = vmatpush1.msra.mxu0 0.0
    %71 = vmatprep.subr.mxu0 0.0
    %72 = vmatpush1.msra.mxu0 0.0
    %73 = vmatprep.subr.mxu0 0.0
    %74 = vmatpush1.msra.mxu0 0.0
    %75 = vmatprep.subr.mxu0 0.0
    %76 = vmatpush1.msra.mxu0 0.0
    %77 = vmatprep.subr.mxu0 0.0
    %78 = vmatpush1.msra.mxu0 0.0
    %79 = vmatprep.subr.mxu0 %v46
    %80 = vmatpush1.msra.mxu0 %v45
    %81 = vmatprep.subr.mxu0 %v43
    %82 = vmatpush1.msra.mxu0 %v42
    %83 = vmatprep.subr.mxu0 %v40
    %84 = vmatpush1.msra.mxu0 %v39
    %85 = vmatprep.subr.mxu0 %v37
    %86 = vmatpush1.msra.mxu0 %v36
    %87 = vmatprep.subr.mxu0 0.0
    %88 = vmatpush2.msra.mxu0 0.0
    %89 = vmatprep.subr.mxu0 0.0
    %90 = vmatpush2.msra.mxu0 0.0
    %91 = vmatprep.subr.mxu0 0.0
    %92 = vmatpush2.msra.mxu0 0.0
    %93 = vmatprep.subr.mxu0 0.0
    %94 = vmatpush2.msra.mxu0 0.0
    %95 = vmatprep.subr.mxu0 0.0
    %96 = vmatpush2.msra.mxu0 0.0
    %97 = vmatprep.subr.mxu0 0.0
    %98 = vmatpush2.msra.mxu0 0.0
    %99 = vmatprep.subr.mxu0 0.0
    %100 = vmatpush2.msra.mxu0 0.0
    %101 = vmatprep.subr.mxu0 0.0
    %102 = vmatpush2.msra.mxu0 0.0
    %103 = vmatprep.subr.mxu0 0.0
    %104 = vmatpush2.msra.mxu0 0.0
    %105 = vmatprep.subr.mxu0 0.0
    %106 = vmatpush2.msra.mxu0 0.0
    %107 = vmatprep.subr.mxu0 0.0
    %108 = vmatpush2.msra.mxu0 0.0
    %109 = vmatprep.subr.mxu0 0.0
    %110 = vmatpush2.msra.mxu0 0.0
    %111 = vmatprep.subr.mxu0 0.0
    %112 = vmatpush2.msra.mxu0 0.0
    %113 = vmatprep.subr.mxu0 0.0
    %114 = vmatpush2.msra.mxu0 0.0
    %115 = vmatprep.subr.mxu0 0.0
    %116 = vmatpush2.msra.mxu0 0.0
    %117 = vmatprep.subr.mxu0 0.0
    %118 = vmatpush2.msra.mxu0 0.0
    %119 = vmatprep.mubr.f32.mxu0 0.0
    %120 = vmatmul.mubr.f32.gmra.mxu0 %v50
    %v121 = vpop.f32.mrf.mxu0
    %v122 = vadd.f32 0.0, %v121
    %v123 = vpop.f32.mrf.mxu0
    %v124 = vadd.f32 0.0, %v123
    %125 = vmatprep.mubr.f32.mxu0 0.0
    %126 = vmatmul.mubr.f32.gmra.mxu0 %v53
    %v127 = vpop.f32.mrf.mxu0
    %v128 = vadd.f32 0.0, %v127
    %v129 = vpop.f32.mrf.mxu0
    %v130 = vadd.f32 0.0, %v129
    %131 = vdwg.mxu0
    %132 = vmatprep.subr.mxu0 0.0
    %133 = vmatpush1.msra.mxu0 0.0
    %134 = vmatprep.subr.mxu0 0.0
    %135 = vmatpush1.msra.mxu0 0.0
    %136 = vmatprep.subr.mxu0 0.0
    %137 = vmatpush1.msra.mxu0 0.0
    %138 = vmatprep.subr.mxu0 0.0
    %139 = vmatpush1.msra.mxu0 0.0
    %140 = vmatprep.subr.mxu0 0.0
    %141 = vmatpush1.msra.mxu0 0.0
    %142 = vmatprep.subr.mxu0 0.0
    %143 = vmatpush1.msra.mxu0 0.0
    %144 = vmatprep.subr.mxu0 0.0
    %145 = vmatpush1.msra.mxu0 0.0
    %146 = vmatprep.subr.mxu0 0.0
    %147 = vmatpush1.msra.mxu0 0.0
    %148 = vmatprep.subr.mxu0 0.0
    %149 = vmatpush1.msra.mxu0 0.0
    %150 = vmatprep.subr.mxu0 0.0
    %151 = vmatpush1.msra.mxu0 0.0
    %152 = vmatprep.subr.mxu0 0.0
    %153 = vmatpush1.msra.mxu0 0.0
    %154 = vmatprep.subr.mxu0 0.0
    %155 = vmatpush1.msra.mxu0 0.0
    %156 = vmatprep.subr.mxu0 0.0
    %157 = vmatpush1.msra.mxu0 %v47
    %158 = vmatprep.subr.mxu0 0.0
    %159 = vmatpush1.msra.mxu0 %v44
    %160 = vmatprep.subr.mxu0 0.0
    %161 = vmatpush1.msra.mxu0 %v41
    %162 = vmatprep.subr.mxu0 0.0
    %163 = vmatpush1.msra.mxu0 %v38
    %164 = vmatprep.subr.mxu0 0.0
    %165 = vmatpush2.msra.mxu0 0.0
    %166 = vmatprep.subr.mxu0 0.0
    %167 = vmatpush2.msra.mxu0 0.0
    %168 = vmatprep.subr.mxu0 0.0
    %169 = vmatpush2.msra.mxu0 0.0
    %170 = vmatprep.subr.mxu0 0.0
    %171 = vmatpush2.msra.mxu0 0.0
    %172 = vmatprep.subr.mxu0 0.0
    %173 = vmatpush2.msra.mxu0 0.0
    %174 = vmatprep.subr.mxu0 0.0
    %175 = vmatpush2.msra.mxu0 0.0
    %176 = vmatprep.subr.mxu0 0.0
    %177 = vmatpush2.msra.mxu0 0.0
    %178 = vmatprep.subr.mxu0 0.0
    %179 = vmatpush2.msra.mxu0 0.0
    %180 = vmatprep.subr.mxu0 0.0
    %181 = vmatpush2.msra.mxu0 0.0
    %182 = vmatprep.subr.mxu0 0.0
    %183 = vmatpush2.msra.mxu0 0.0
    %184 = vmatprep.subr.mxu0 0.0
    %185 = vmatpush2.msra.mxu0 0.0
    %186 = vmatprep.subr.mxu0 0.0
    %187 = vmatpush2.msra.mxu0 0.0
    %188 = vmatprep.subr.mxu0 0.0
    %189 = vmatpush2.msra.mxu0 0.0
    %190 = vmatprep.subr.mxu0 0.0
    %191 = vmatpush2.msra.mxu0 0.0
    %192 = vmatprep.subr.mxu0 0.0
    %193 = vmatpush2.msra.mxu0 0.0
    %194 = vmatprep.subr.mxu0 0.0
    %195 = vmatpush2.msra.mxu0 0.0
    %196 = vmatprep.mubr.f32.mxu0 0.0
    %197 = vmatmul.mubr.f32.gmra.mxu0 %v50
    %v198 = vpop.f32.mrf.mxu0
    %v199 = vadd.f32 0.0, %v198
    %v200 = vpop.f32.mrf.mxu0
    %201 = vmatprep.mubr.f32.mxu0 0.0
    %202 = vmatmul.mubr.f32.gmra.mxu0 %v53
    %v203 = vpop.f32.mrf.mxu0
    %v204 = vadd.f32 0.0, %v203
    %v205 = vpop.f32.mrf.mxu0
    %206 = vdwg.mxu0
    %v207 = vld [vmem:[%s4] sm:$0x1]
    %v208 = vlaneseq
    %v209 = vshrl.u32 %v208, 7
    %v210 = vsub.s32 0, %v209
    %v211 = vrot.slane %v207, %v210
    %v212 = vadd.f32 %v122, %v211
    %v213 = vadd.f32 %v128, %v211
    %v214 = vld [vmem:[%s4 + $0x1] sm:$0x1]
    %v215 = vlaneseq
    %v216 = vshrl.u32 %v215, 7
    %v217 = vsub.s32 0, %v216
    %v218 = vrot.slane %v214, %v217
    %v219 = vadd.f32 %v124, %v218
    %v220 = vadd.f32 %v130, %v218
    %v221 = vld [vmem:[%s4 + $0x2] sm:$0x1]
    %v222 = vlaneseq
    %v223 = vshrl.u32 %v222, 7
    %v224 = vsub.s32 0, %v223
    %v225 = vrot.slane %v221, %v224
    %v226 = vadd.f32 %v199, %v225
    %v227 = vadd.f32 %v204, %v225
    %v228 = vld [vmem:[%s1] sm:$0xff]
    %v229 = vld [vmem:[%s1 + $0x8] sm:$0xff]
    %230 = vmatprep.subr.mxu0 0.0
    %231 = vmatpush1.xpose.msra.mxu0 0.0
    %232 = vmatprep.subr.mxu0 0.0
    %233 = vmatpush1.xpose.msra.mxu0 0.0
    %234 = vmatprep.subr.mxu0 0.0
    %235 = vmatpush1.xpose.msra.mxu0 0.0
    %236 = vmatprep.subr.mxu0 0.0
    %237 = vmatpush1.xpose.msra.mxu0 0.0
    %238 = vmatprep.subr.mxu0 0.0
    %239 = vmatpush1.xpose.msra.mxu0 0.0
    %240 = vmatprep.subr.mxu0 0.0
    %241 = vmatpush1.xpose.msra.mxu0 0.0
    %242 = vmatprep.subr.mxu0 0.0
    %243 = vmatpush1.xpose.msra.mxu0 0.0
    %244 = vmatprep.subr.mxu0 0.0
    %245 = vmatpush1.xpose.msra.mxu0 0.0
    %246 = vmatprep.subr.mxu0 0.0
    %247 = vmatpush1.xpose.msra.mxu0 0.0
    %248 = vmatprep.subr.mxu0 0.0
    %249 = vmatpush1.xpose.msra.mxu0 0.0
    %250 = vmatprep.subr.mxu0 0.0
    %251 = vmatpush1.xpose.msra.mxu0 0.0
    %252 = vmatprep.subr.mxu0 0.0
    %253 = vmatpush1.xpose.msra.mxu0 0.0
    %254 = vmatprep.subr.mxu0 0.0
    %255 = vmatpush1.xpose.msra.mxu0 0.0
    %256 = vmatprep.subr.mxu0 0.0
    %257 = vmatpush1.xpose.msra.mxu0 0.0
    %258 = vmatprep.subr.mxu0 0.0
    %259 = vmatpush1.xpose.msra.mxu0 %v220
    %260 = vmatprep.subr.mxu0 0.0
    %261 = vmatpush1.xpose.msra.mxu0 %v219
    %262 = vmatprep.subr.mxu0 0.0
    %263 = vmatpush2.xpose.msra.mxu0 0.0
    %264 = vmatprep.subr.mxu0 0.0
    %265 = vmatpush2.xpose.msra.mxu0 0.0
    %266 = vmatprep.subr.mxu0 0.0
    %267 = vmatpush2.xpose.msra.mxu0 0.0
    %268 = vmatprep.subr.mxu0 0.0
    %269 = vmatpush2.xpose.msra.mxu0 0.0
    %270 = vmatprep.subr.mxu0 0.0
    %271 = vmatpush2.xpose.msra.mxu0 0.0
    %272 = vmatprep.subr.mxu0 0.0
    %273 = vmatpush2.xpose.msra.mxu0 0.0
    %274 = vmatprep.subr.mxu0 0.0
    %275 = vmatpush2.xpose.msra.mxu0 0.0
    %276 = vmatprep.subr.mxu0 0.0
    %277 = vmatpush2.xpose.msra.mxu0 0.0
    %278 = vmatprep.subr.mxu0 0.0
    %279 = vmatpush2.xpose.msra.mxu0 0.0
    %280 = vmatprep.subr.mxu0 0.0
    %281 = vmatpush2.xpose.msra.mxu0 0.0
    %282 = vmatprep.subr.mxu0 0.0
    %283 = vmatpush2.xpose.msra.mxu0 0.0
    %284 = vmatprep.subr.mxu0 0.0
    %285 = vmatpush2.xpose.msra.mxu0 0.0
    %286 = vmatprep.subr.mxu0 0.0
    %287 = vmatpush2.xpose.msra.mxu0 0.0
    %288 = vmatprep.subr.mxu0 0.0
    %289 = vmatpush2.xpose.msra.mxu0 0.0
    %290 = vmatprep.subr.mxu0 0.0
    %291 = vmatpush2.xpose.msra.mxu0 0.0
    %292 = vmatprep.subr.mxu0 0.0
    %293 = vmatpush2.xpose.msra.mxu0 0.0
    %294 = vmatprep.mubr.f32.mxu0 0.0
    %295 = vmatmul.mubr.f32.gmra.mxu0 %v212
    %v296 = vpop.f32.mrf.mxu0
    %v297 = vadd.f32 %v228, %v296
    %v298 = vpop.f32.mrf.mxu0
    %299 = vmatprep.mubr.f32.mxu0 0.0
    %300 = vmatmul.mubr.f32.gmra.mxu0 %v213
    %v301 = vpop.f32.mrf.mxu0
    %v302 = vadd.f32 %v229, %v301
    %v303 = vpop.f32.mrf.mxu0
    %304 = vdwg.mxu0
    %vm305 = vcmask 130048
    %v306 = vsel %vm305, %v297, -inf
    %307 = vmax.xlane.f32.xlu0 %v306
    %v308 = vpop.xlane.xlu0 %307
    %v309 = vsel %vm305, %v302, -inf
    %310 = vmax.xlane.f32.xlu0 %v309
    %v311 = vpop.xlane.xlu0 %310
    %v312 = vsub.f32 %v297, %v308
    %v313 = vsub.f32 %v302, %v311
    %v314 = vmul.f32 %v312, 1.442695
    %v315 = vpow.pop %v314
    %v316 = vmul.f32 %v313, 1.442695
    %v317 = vpow.pop %v316
    %v318 = vsel %vm305, %v315, 0.0
    %319 = vadd.xlane.f32.xlu0 %v318
    %v320 = vpop.xlane.xlu0 %319
    %v321 = vsel %vm305, %v317, 0.0
    %322 = vadd.xlane.f32.xlu0 %v321
    %v323 = vpop.xlane.xlu0 %322
    %v324 = vrcp.pop %v320
    %v325 = vrcp.pop %v323
    %v326 = vmul.f32 %v315, %v324
    %v327 = vmul.f32 %v317, %v325
    %v329 = vsel %vm305, %v326, 0
    %v332 = vsel %vm305, %v327, 0
    %334 = vmatprep.subr.mxu0 0.0
    %335 = vmatpush1.msra.mxu0 0.0
    %336 = vmatprep.subr.mxu0 0.0
    %337 = vmatpush1.msra.mxu0 0.0
    %338 = vmatprep.subr.mxu0 0.0
    %339 = vmatpush1.msra.mxu0 0.0
    %340 = vmatprep.subr.mxu0 0.0
    %341 = vmatpush1.msra.mxu0 0.0
    %342 = vmatprep.subr.mxu0 0.0
    %343 = vmatpush1.msra.mxu0 0.0
    %344 = vmatprep.subr.mxu0 0.0
    %345 = vmatpush1.msra.mxu0 0.0
    %346 = vmatprep.subr.mxu0 0.0
    %347 = vmatpush1.msra.mxu0 0.0
    %348 = vmatprep.subr.mxu0 0.0
    %349 = vmatpush1.msra.mxu0 0.0
    %350 = vmatprep.subr.mxu0 0.0
    %351 = vmatpush1.msra.mxu0 0.0
    %352 = vmatprep.subr.mxu0 0.0
    %353 = vmatpush1.msra.mxu0 0.0
    %354 = vmatprep.subr.mxu0 0.0
    %355 = vmatpush1.msra.mxu0 0.0
    %356 = vmatprep.subr.mxu0 0.0
    %357 = vmatpush1.msra.mxu0 0.0
    %358 = vmatprep.subr.mxu0 0.0
    %359 = vmatpush1.msra.mxu0 0.0
    %360 = vmatprep.subr.mxu0 0.0
    %361 = vmatpush1.msra.mxu0 0.0
    %362 = vmatprep.subr.mxu0 0.0
    %363 = vmatpush1.msra.mxu0 %v227
    %364 = vmatprep.subr.mxu0 0.0
    %365 = vmatpush1.msra.mxu0 %v226
    %366 = vmatprep.subr.mxu0 0.0
    %367 = vmatpush2.msra.mxu0 0.0
    %368 = vmatprep.subr.mxu0 0.0
    %369 = vmatpush2.msra.mxu0 0.0
    %370 = vmatprep.subr.mxu0 0.0
    %371 = vmatpush2.msra.mxu0 0.0
    %372 = vmatprep.subr.mxu0 0.0
    %373 = vmatpush2.msra.mxu0 0.0
    %374 = vmatprep.subr.mxu0 0.0
    %375 = vmatpush2.msra.mxu0 0.0
    %376 = vmatprep.subr.mxu0 0.0
    %377 = vmatpush2.msra.mxu0 0.0
    %378 = vmatprep.subr.mxu0 0.0
    %379 = vmatpush2.msra.mxu0 0.0
    %380 = vmatprep.subr.mxu0 0.0
    %381 = vmatpush2.msra.mxu0 0.0
    %382 = vmatprep.subr.mxu0 0.0
    %383 = vmatpush2.msra.mxu0 0.0
    %384 = vmatprep.subr.mxu0 0.0
    %385 = vmatpush2.msra.mxu0 0.0
    %386 = vmatprep.subr.mxu0 0.0
    %387 = vmatpush2.msra.mxu0 0.0
    %388 = vmatprep.subr.mxu0 0.0
    %389 = vmatpush2.msra.mxu0 0.0
    %390 = vmatprep.subr.mxu0 0.0
    %391 = vmatpush2.msra.mxu0 0.0
    %392 = vmatprep.subr.mxu0 0.0
    %393 = vmatpush2.msra.mxu0 0.0
    %394 = vmatprep.subr.mxu0 0.0
    %395 = vmatpush2.msra.mxu0 0.0
    %396 = vmatprep.subr.mxu0 0.0
    %397 = vmatpush2.msra.mxu0 0.0
    %398 = vmatprep.mubr.f32.mxu0 0.0
    %399 = vmatmul.mubr.f32.gmra.mxu0 %v329
    %v400 = vpop.f32.mrf.mxu0
    %v401 = vadd.f32 0.0, %v400
    %v402 = vpop.f32.mrf.mxu0
    %403 = vmatprep.mubr.f32.mxu0 0.0
    %404 = vmatmul.mubr.f32.gmra.mxu0 %v332
    %v405 = vpop.f32.mrf.mxu0
    %v406 = vadd.f32 0.0, %v405
    %v407 = vpop.f32.mrf.mxu0
    %408 = vdwg.mxu0
    %v409 = vld [vmem:[#allocation2] sm:$0xff]
    %v410 = vld [vmem:[#allocation2 + $0x10] sm:$0xff]
    %v411 = vld [vmem:[#allocation2 + $0x20] sm:$0xff]
    %v412 = vld [vmem:[#allocation2 + $0x30] sm:$0xff]
    %v413 = vld [vmem:[%s4 + $0x3] sm:$0x1]
    %v414 = vlaneseq
    %v415 = vshrl.u32 %v414, 7
    %v416 = vsub.s32 0, %v415
    %v417 = vrot.slane %v413, %v416
    %v419 = vsel %vm48, %v401, 0
    %v422 = vsel %vm48, %v406, 0
    %424 = vmatprep.subr.mxu0 0.0
    %425 = vmatpush1.msra.mxu0 0.0
    %426 = vmatprep.subr.mxu0 0.0
    %427 = vmatpush1.msra.mxu0 0.0
    %428 = vmatprep.subr.mxu0 0.0
    %429 = vmatpush1.msra.mxu0 0.0
    %430 = vmatprep.subr.mxu0 0.0
    %431 = vmatpush1.msra.mxu0 0.0
    %432 = vmatprep.subr.mxu0 0.0
    %433 = vmatpush1.msra.mxu0 0.0
    %434 = vmatprep.subr.mxu0 0.0
    %435 = vmatpush1.msra.mxu0 0.0
    %436 = vmatprep.subr.mxu0 0.0
    %437 = vmatpush1.msra.mxu0 0.0
    %438 = vmatprep.subr.mxu0 0.0
    %439 = vmatpush1.msra.mxu0 0.0
    %440 = vmatprep.subr.mxu0 0.0
    %441 = vmatpush1.msra.mxu0 0.0
    %442 = vmatprep.subr.mxu0 0.0
    %443 = vmatpush1.msra.mxu0 0.0
    %444 = vmatprep.subr.mxu0 0.0
    %445 = vmatpush1.msra.mxu0 0.0
    %446 = vmatprep.subr.mxu0 0.0
    %447 = vmatpush1.msra.mxu0 0.0
    %448 = vmatprep.subr.mxu0 0.0
    %449 = vmatpush1.msra.mxu0 %v412
    %450 = vmatprep.subr.mxu0 0.0
    %451 = vmatpush1.msra.mxu0 %v411
    %452 = vmatprep.subr.mxu0 0.0
    %453 = vmatpush1.msra.mxu0 %v410
    %454 = vmatprep.subr.mxu0 0.0
    %455 = vmatpush1.msra.mxu0 %v409
    %456 = vmatprep.subr.mxu0 0.0
    %457 = vmatpush2.msra.mxu0 0.0
    %458 = vmatprep.subr.mxu0 0.0
    %459 = vmatpush2.msra.mxu0 0.0
    %460 = vmatprep.subr.mxu0 0.0
    %461 = vmatpush2.msra.mxu0 0.0
    %462 = vmatprep.subr.mxu0 0.0
    %463 = vmatpush2.msra.mxu0 0.0
    %464 = vmatprep.subr.mxu0 0.0
    %465 = vmatpush2.msra.mxu0 0.0
    %466 = vmatprep.subr.mxu0 0.0
    %467 = vmatpush2.msra.mxu0 0.0
    %468 = vmatprep.subr.mxu0 0.0
    %469 = vmatpush2.msra.mxu0 0.0
    %470 = vmatprep.subr.mxu0 0.0
    %471 = vmatpush2.msra.mxu0 0.0
    %472 = vmatprep.subr.mxu0 0.0
    %473 = vmatpush2.msra.mxu0 0.0
    %474 = vmatprep.subr.mxu0 0.0
    %475 = vmatpush2.msra.mxu0 0.0
    %476 = vmatprep.subr.mxu0 0.0
    %477 = vmatpush2.msra.mxu0 0.0
    %478 = vmatprep.subr.mxu0 0.0
    %479 = vmatpush2.msra.mxu0 0.0
    %480 = vmatprep.subr.mxu0 0.0
    %481 = vmatpush2.msra.mxu0 0.0
    %482 = vmatprep.subr.mxu0 0.0
    %483 = vmatpush2.msra.mxu0 0.0
    %484 = vmatprep.subr.mxu0 0.0
    %485 = vmatpush2.msra.mxu0 0.0
    %486 = vmatprep.subr.mxu0 0.0
    %487 = vmatpush2.msra.mxu0 0.0
    %488 = vmatprep.mubr.f32.mxu0 0.0
    %489 = vmatmul.mubr.f32.gmra.mxu0 %v419
    %v490 = vpop.f32.mrf.mxu0
    %v491 = vadd.f32 %v417, %v490
    %v492 = vpop.f32.mrf.mxu0
    %493 = vmatprep.mubr.f32.mxu0 0.0
    %494 = vmatmul.mubr.f32.gmra.mxu0 %v422
    %v495 = vpop.f32.mrf.mxu0
    %v496 = vadd.f32 %v417, %v495
    %v497 = vpop.f32.mrf.mxu0
    %498 = vdwg.mxu0
    %v499 = vadd.f32 %v491, %v34
    %v500 = vadd.f32 %v496, %v35
    %v501 = vsel %vm48, %v499, 0.0
    %502 = vadd.xlane.f32.xlu0 %v501
    %v503 = vpop.xlane.xlu0 %502
    %v504 = vsel %vm48, %v500, 0.0
    %505 = vadd.xlane.f32.xlu0 %v504
    %v506 = vpop.xlane.xlu0 %505
    %v507 = vrcp.pop 32.0
    %v508 = vmul.f32 %v503, %v507
    %v509 = vmul.f32 %v506, %v507
    %v510 = vsub.f32 %v499, %v508
    %v511 = vsub.f32 %v500, %v509
    %v512 = vmul.f32 %v510, %v510
    %v513 = vmul.f32 %v511, %v511
    %v514 = vsel %vm48, %v512, 0.0
    %515 = vadd.xlane.f32.xlu0 %v514
    %v516 = vpop.xlane.xlu0 %515
    %v517 = vsel %vm48, %v513, 0.0
    %518 = vadd.xlane.f32.xlu0 %v517
    %v519 = vpop.xlane.xlu0 %518
    %v520 = vmul.f32 %v516, %v507
    %v521 = vmul.f32 %v519, %v507
    %v522 = vadd.f32 %v520, 1e-05
    %v523 = vadd.f32 %v521, 1e-05
    %v524 = vrsqrt.pop %v522
    %v525 = vrsqrt.pop %v523
    %v526 = vmul.f32 %v510, %v524
    %v527 = vmul.f32 %v511, %v525
    %v528 = vld [vmem:[%s4 + $0x4] sm:$0x1]
    %v529 = vlaneseq
    %v530 = vshrl.u32 %v529, 7
    %v531 = vsub.s32 0, %v530
    %v532 = vrot.slane %v528, %v531
    %v533 = vmul.f32 %v526, %v532
    %v534 = vmul.f32 %v527, %v532
    %v535 = vld [vmem:[%s4 + $0x5] sm:$0x1]
    %v536 = vlaneseq
    %v537 = vshrl.u32 %v536, 7
    %v538 = vsub.s32 0, %v537
    %v539 = vrot.slane %v535, %v538
    %v540 = vadd.f32 %v533, %v539
    %v541 = vadd.f32 %v534, %v539
    %v542 = vld [vmem:[#allocation2 + $0x8] sm:$0xff]
    %v543 = vld [vmem:[#allocation2 + $0x18] sm:$0xff]
    %v544 = vld [vmem:[#allocation2 + $0x28] sm:$0xff]
    %v545 = vld [vmem:[#allocation2 + $0x38] sm:$0xff]
    %v546 = vld [vmem:[%s4 + $0x6] sm:$0x1]
    %v547 = vlaneseq
    %v548 = vshrl.u32 %v547, 7
    %v549 = vsub.s32 0, %v548
    %v550 = vrot.slane %v546, %v549
    %v552 = vsel %vm48, %v540, 0
    %v555 = vsel %vm48, %v541, 0
    %557 = vmatprep.subr.mxu0 0.0
    %558 = vmatpush1.msra.mxu0 0.0
    %559 = vmatprep.subr.mxu0 0.0
    %560 = vmatpush1.msra.mxu0 0.0
    %561 = vmatprep.subr.mxu0 0.0
    %562 = vmatpush1.msra.mxu0 0.0
    %563 = vmatprep.subr.mxu0 0.0
    %564 = vmatpush1.msra.mxu0 0.0
    %565 = vmatprep.subr.mxu0 0.0
    %566 = vmatpush1.msra.mxu0 0.0
    %567 = vmatprep.subr.mxu0 0.0
    %568 = vmatpush1.msra.mxu0 0.0
    %569 = vmatprep.subr.mxu0 0.0
    %570 = vmatpush1.msra.mxu0 0.0
    %571 = vmatprep.subr.mxu0 0.0
    %572 = vmatpush1.msra.mxu0 0.0
    %573 = vmatprep.subr.mxu0 0.0
    %574 = vmatpush1.msra.mxu0 0.0
    %575 = vmatprep.subr.mxu0 0.0
    %576 = vmatpush1.msra.mxu0 0.0
    %577 = vmatprep.subr.mxu0 0.0
    %578 = vmatpush1.msra.mxu0 0.0
    %579 = vmatprep.subr.mxu0 0.0
    %580 = vmatpush1.msra.mxu0 0.0
    %581 = vmatprep.subr.mxu0 0.0
    %582 = vmatpush1.msra.mxu0 %v545
    %583 = vmatprep.subr.mxu0 0.0
    %584 = vmatpush1.msra.mxu0 %v544
    %585 = vmatprep.subr.mxu0 0.0
    %586 = vmatpush1.msra.mxu0 %v543
    %587 = vmatprep.subr.mxu0 0.0
    %588 = vmatpush1.msra.mxu0 %v542
    %589 = vmatprep.subr.mxu0 0.0
    %590 = vmatpush2.msra.mxu0 0.0
    %591 = vmatprep.subr.mxu0 0.0
    %592 = vmatpush2.msra.mxu0 0.0
    %593 = vmatprep.subr.mxu0 0.0
    %594 = vmatpush2.msra.mxu0 0.0
    %595 = vmatprep.subr.mxu0 0.0
    %596 = vmatpush2.msra.mxu0 0.0
    %597 = vmatprep.subr.mxu0 0.0
    %598 = vmatpush2.msra.mxu0 0.0
    %599 = vmatprep.subr.mxu0 0.0
    %600 = vmatpush2.msra.mxu0 0.0
    %601 = vmatprep.subr.mxu0 0.0
    %602 = vmatpush2.msra.mxu0 0.0
    %603 = vmatprep.subr.mxu0 0.0
    %604 = vmatpush2.msra.mxu0 0.0
    %605 = vmatprep.subr.mxu0 0.0
    %606 = vmatpush2.msra.mxu0 0.0
    %607 = vmatprep.subr.mxu0 0.0
    %608 = vmatpush2.msra.mxu0 0.0
    %609 = vmatprep.subr.mxu0 0.0
    %610 = vmatpush2.msra.mxu0 0.0
    %611 = vmatprep.subr.mxu0 0.0
    %612 = vmatpush2.msra.mxu0 0.0
    %613 = vmatprep.subr.mxu0 0.0
    %614 = vmatpush2.msra.mxu0 0.0
    %615 = vmatprep.subr.mxu0 0.0
    %616 = vmatpush2.msra.mxu0 0.0
    %617 = vmatprep.subr.mxu0 0.0
    %618 = vmatpush2.msra.mxu0 0.0
    %619 = vmatprep.subr.mxu0 0.0
    %620 = vmatpush2.msra.mxu0 0.0
    %621 = vmatprep.mubr.f32.mxu0 0.0
    %622 = vmatmul.mubr.f32.gmra.mxu0 %v552
    %v623 = vpop.f32.mrf.mxu0
    %v624 = vadd.f32 %v550, %v623
    %v625 = vpop.f32.mrf.mxu0
    %626 = vmatprep.mubr.f32.mxu0 0.0
    %627 = vmatmul.mubr.f32.gmra.mxu0 %v555
    %v628 = vpop.f32.mrf.mxu0
    %v629 = vadd.f32 %v550, %v628
    %v630 = vpop.f32.mrf.mxu0
    %631 = vdwg.mxu0
    %632 = vst [vmem:[%s5] sm:$0xff] %v624
    %633 = vst [vmem:[%s5 + $0x8] sm:$0xff] %v629
    // Predicated region
    $region26: #{tran_model_forward.1} parent=1 // pred_check
      _
    $region27: #{tran_model_forward.1} parent=1 // pred_check_branch
      %635 = sbr.rel (0) target = $region29
    $region28: #{tran_model_forward.1} parent=1 // pred_region
      _
    $region29: #{tran_model_forward.1} parent=1 // pred_fallthru
      _
    // Predicated region
    $region30: #{tran_model_forward.1} parent=1 // pred_check
      _
    $region31: #{tran_model_forward.1} parent=1 // pred_check_branch
      %637 = sbr.rel (0) target = $region33
    $region32: #{tran_model_forward.1} parent=1 // pred_region
      _
    $region33: #{tran_model_forward.1} parent=1 // pred_fallthru
      _
    %638 = vsyncpa [#allocation3], 1

</llo_original>
